<compile_context>
chip_gen: v5e
topology: v5e:2x2
jax: 0.10.0
libtpu: 0.0.40
codegen_flags: <defaults>
</compile_context>

<pallas_src>
import jax
import jax.numpy as jnp
from jax.experimental import pallas as pl
from jax.experimental.pallas import tpu as pltpu


def _mul_kernel(img_ref, mask_ref, out_ref):
    # mask_ref is (TS, TL) or (1, TL); jnp broadcasting covers both.
    m = mask_ref[...]
    if m.dtype != img_ref.dtype:
        m = m.astype(img_ref.dtype)  # VPU cast is free; HBM read stays at native width
    out_ref[...] = img_ref[...] * m


def _sublane_unit(dtype) -> int:
    # Min sublane tile: 8 for 4-byte, 16 for 2-byte, 32 for 1-byte dtypes.
    return max(8, 32 // jnp.dtype(dtype).itemsize)


def _pick_tile(dim: int, unit: int, cap: int) -> int:
    """Tile for one axis: a multiple of `unit`, <= cap, preferring exact
    divisors of `dim`.  Falls back to `cap` (ragged last block via a cdiv
    grid) instead of a sub-`unit` tile or a single huge full-dim block."""
    if dim <= unit:
        return dim                       # full (small) dim is always legal
    cap = min(cap, dim)
    cap = (cap // unit) * unit
    if cap < unit:
        return dim
    for t in range(cap, unit - 1, -unit):
        if dim % t == 0:
            return t
    return cap                           # ragged last block handled by cdiv grid


_SMALL_BYTES = 512 * 1024          # single-block (no grid) threshold
_BLOCK_BYTES = 4 * 1024 * 1024     # per streamed array per grid step
_VMEM_LIMIT = 48 * 1024 * 1024     # explicit scoped-VMEM limit (safe on v5e/v6e/v7x)


def _pallas_masked_mul(img2d: jnp.ndarray, mask2d: jnp.ndarray) -> jnp.ndarray:
    """img2d: (R, L); mask2d: (Rm, L) with Rm in {1, R} (any numeric dtype).

    Returns img2d * mask2d in img2d's dtype (mask broadcast over rows if Rm==1).
    """
    R, L = img2d.shape
    Rm = mask2d.shape[0]
    dtype = img2d.dtype
    isz = jnp.dtype(dtype).itemsize
    pinned = Rm == 1

    # --- Small inputs: one full-array block, no grid, no per-step overhead.
    if R * L * isz <= _SMALL_BYTES:
        return pl.pallas_call(
            _mul_kernel,
            out_shape=jax.ShapeDtypeStruct((R, L), dtype),
        )(img2d, mask2d)

    # --- Large inputs: big (~4 MiB) lane-dense blocks, double-buffered.
    sub = _sublane_unit(dtype)
    if not pinned:
        sub = max(sub, _sublane_unit(mask2d.dtype))  # e.g. int8 mask -> 32-row unit

    # Lane tile first (lane-dense DMA / unmasked vst), then row tile from budget.
    tl_cap = max(128, _BLOCK_BYTES // (sub * isz))
    TL = _pick_tile(L, 128, tl_cap)
    nL = pl.cdiv(L, TL)

    ts_cap = max(sub, (_BLOCK_BYTES // (TL * isz)) // sub * sub)
    if nL == 1 and R >= 2 * sub:
        # Megacore guarantee: if the lane axis has only one block, make sure
        # the parallel row axis has >= 2 blocks so both v7x TCs get work.
        ts_cap = min(ts_cap, max(sub, (R // 2) // sub * sub))
    TS = _pick_tile(R, sub, ts_cap)
    nR = pl.cdiv(R, TS)

    mask_ts = 1 if pinned else TS

    if nL >= 2:
        # Lane-block index outermost, row-block index fastest-varying: the
        # pinned (1, TL) mask block keeps the same block index across
        # consecutive steps, so the pipeline elides its re-DMA.
        grid = (nL, nR)
        data_map = lambda j, i: (i, j)
        mask_map = (lambda j, i: (0, j)) if pinned else (lambda j, i: (i, j))
    else:
        grid = (nR, nL)
        data_map = lambda i, j: (i, j)
        mask_map = (lambda i, j: (0, j)) if pinned else (lambda i, j: (i, j))

    return pl.pallas_call(
        _mul_kernel,
        out_shape=jax.ShapeDtypeStruct((R, L), dtype),
        grid=grid,
        in_specs=[
            pl.BlockSpec((TS, TL), data_map),
            pl.BlockSpec((mask_ts, TL), mask_map),
        ],
        out_specs=pl.BlockSpec((TS, TL), data_map),
        compiler_params=pltpu.CompilerParams(
            dimension_semantics=("parallel", "parallel"),
            vmem_limit_bytes=_VMEM_LIMIT,
        ),
    )(img2d, mask2d)


def _to_nchw(x: jnp.ndarray) -> jnp.ndarray:
    """Rough equivalent of torch_reshape: ensure a 4-D NCHW tensor."""
    x = jnp.asarray(x)
    if x.ndim == 2:
        return x[None, None]
    if x.ndim == 3:
        return x[None]
    if x.ndim == 4:
        return x
    raise ValueError(f"expected 2-4 dims, got shape {x.shape}")


def inpainting_forward(img: jnp.ndarray, mask: jnp.ndarray) -> jnp.ndarray:
    """Equivalent of Inpainiting.forward(img, mask) -> img * mask.

    img:  (N, C, H, W) (or 2/3-D, reshaped like torch_reshape)
    mask: broadcastable to img's shape (e.g. (1, 1, H, W) or (N, C, H, W))
    Returns the elementwise product in img's (floating) dtype.
    """
    img = _to_nchw(img)
    mask = _to_nchw(mask)

    # Keep the native floating dtype (cast non-float inputs to f32, like the module).
    dtype = img.dtype if jnp.issubdtype(img.dtype, jnp.floating) else jnp.float32
    img = img.astype(dtype)

    # Keep the mask in its native (often 1-byte) dtype; the kernel casts it on
    # the VPU, so full-size masks read at native width from HBM.
    if mask.dtype == jnp.bool_:
        mask = mask.astype(jnp.int8)

    out_shape = jnp.broadcast_shapes(img.shape, mask.shape)
    N, C, H, W = out_shape
    R, L = N * C, H * W

    img2d = jnp.broadcast_to(img, out_shape).reshape(R, L)

    Nm, Cm = mask.shape[0], mask.shape[1]
    if Nm == 1 and Cm == 1:
        # Mask constant over (N, C): keep a single (1, L) row in HBM; the
        # kernel broadcasts it in VMEM per tile (HBM traffic ~2x output).
        mask2d = jnp.broadcast_to(mask, (1, 1, H, W)).reshape(1, L)
    else:
        # TODO(synk): (N,1,H,W)/(1,C,H,W) partial broadcasts are still
        # materialized in HBM; a 3-D grid with a pinned index_map would avoid it.
        mask2d = jnp.broadcast_to(mask, out_shape).reshape(R, L)

    out2d = _pallas_masked_mul(img2d, mask2d)
    return out2d.reshape(out_shape)


if __name__ == "__main__":
    key = jax.random.PRNGKey(0)
    k_img, k_mask = jax.random.split(key)

    # Small shape consistent with the module (single full-block path).
    N, C, H, W = 2, 4, 16, 16
    img = jax.random.normal(k_img, (N, C, H, W), dtype=jnp.float32)
    mask = (jax.random.uniform(k_mask, (1, 1, H, W)) > 0.5).astype(jnp.float32)

    out = jax.block_until_ready(inpainting_forward(img, mask))
    ref = img * jnp.broadcast_to(mask, img.shape)
    assert out.shape == (N, C, H, W)
    assert out.dtype == img.dtype
    assert jnp.array_equal(out, ref)

    # Tiled path: pinned (1,1,H,W) float mask; row axis split for megacore.
    N2, C2, H2, W2 = 4, 8, 128, 256
    img2 = jax.random.normal(k_img, (N2, C2, H2, W2), dtype=jnp.float32)
    mask2 = (jax.random.uniform(k_mask, (1, 1, H2, W2)) > 0.5).astype(jnp.float32)
    out2 = jax.block_until_ready(inpainting_forward(img2, mask2))
    ref2 = img2 * jnp.broadcast_to(mask2, img2.shape)
    assert jnp.array_equal(out2, ref2)

    # Tiled path: full-size boolean mask kept at 1 byte/elem in HBM, cast in-kernel.
    N3, C3, H3, W3 = 4, 4, 128, 128
    img3 = jax.random.normal(k_img, (N3, C3, H3, W3), dtype=jnp.float32)
    mask3 = jax.random.uniform(k_mask, (N3, C3, H3, W3)) > 0.5
    out3 = jax.block_until_ready(inpainting_forward(img3, mask3))
    ref3 = img3 * mask3.astype(jnp.float32)
    assert out3.dtype == jnp.float32
    assert jnp.array_equal(out3, ref3)

    print("KERNEL_OK")
</pallas_src>

<mosaic_0001>
module attributes {stable_mosaic.version = 11 : i64} {
  func.func @_mul_kernel(%arg0: memref<8x256xf32, #tpu.memory_space<vmem>>, %arg1: memref<1x256xf32, #tpu.memory_space<vmem>>, %arg2: memref<8x256xf32, #tpu.memory_space<vmem>>) attributes {dimension_semantics = [], scalar_prefetch = 0 : i64, scratch_operands = 0 : i64, tpu.core_type = #tpu.core_type<tc>} {
    %c0 = arith.constant 0 : index
    %c0_0 = arith.constant 0 : index
    %0 = vector.load %arg1[%c0, %c0_0] : memref<1x256xf32, #tpu.memory_space<vmem>>, vector<1x256xf32>
    %c0_1 = arith.constant 0 : index
    %c0_2 = arith.constant 0 : index
    %1 = vector.load %arg0[%c0_1, %c0_2] : memref<8x256xf32, #tpu.memory_space<vmem>>, vector<8x256xf32>
    %2 = vector.broadcast %0 : vector<1x256xf32> to vector<8x256xf32>
    %3 = arith.mulf %1, %2 : vector<8x256xf32>
    %c0_3 = arith.constant 0 : index
    %c0_4 = arith.constant 0 : index
    %4 = vector.load %arg2[%c0_3, %c0_4] : memref<8x256xf32, #tpu.memory_space<vmem>>, vector<8x256xf32>
    tpu.vector_store %arg2[%c0_3, %c0_4], %3 {strides = array<i32>} : memref<8x256xf32, #tpu.memory_space<vmem>>, vector<8x256xf32>,
    return
  }
}

</mosaic_0001>

<llo_original>
// kernel: tpu_custom_call.1
$region0: #{tpu_custom_call.1}
  #allocation0 [shape = 'u32[]', space=smem, size = 0x4, offset = 0x4, fixed_abs, tag = 'smem constant byte address 0x4 - core index']
  #allocation1 [shape = 'u32[72,128]{1,0:T(1,128)}', space=vmem, size = 0x9000, scoped, tag = 'internal scratch']
  %s0 = inlined_call_operand.hbm [shape: f32[8,256], index: 0, kind: input, shape index: {}]
  %s1 = inlined_call_operand.hbm [shape: f32[1,256], index: 1, kind: input, shape index: {}]
  %s2 = inlined_call_operand.hbm [shape: f32[8,256], index: 2, kind: output, shape index: {}]
  %s3 = sld [smem:[#allocation0]]
  $region26: #{tpu_custom_call.1} parent=0
    _
  %s5 = ssub.s32 1, %s3
  %s6 = scalar_select 0, %s5, %s3
  $region1: #{tpu_custom_call.1} parent=0
    #allocation2 [shape = 'u8[8192]{0}', space=vmem, size = 0x2000, scoped, tag = 'input window, operand 0, single buffered']
    #allocation3 [shape = 's32[1]{0}', space=sflag, size = 0x4, scoped, tag = 'scoped memory for tpu_custom_call.1']
    #allocation4 [shape = 's32[1]{0}', space=sflag, size = 0x4, scoped, tag = 'scoped memory for tpu_custom_call.1']
    #allocation5 [shape = 'u8[1024]{0}', space=vmem, size = 0x400, scoped, tag = 'input window, operand 1, single buffered']
    #allocation6 [shape = 's32[1]{0}', space=sflag, size = 0x4, scoped, tag = 'scoped memory for tpu_custom_call.1']
    #allocation7 [shape = 'u8[8192]{0}', space=vmem, size = 0x2000, scoped, tag = 'output window, operand 0, single buffered']
    %7 = vsyncpa [#allocation3], 0
    %8 = vsyncpa [#allocation6], 0
    %9 = vsyncpa [#allocation4], 0
    // Predicated region
    $region2: #{tpu_custom_call.1} parent=1 // pred_check
      _
    $region3: #{tpu_custom_call.1} parent=1 // pred_check_branch
      %11 = sbr.rel (0) target = $region5
    $region4: #{tpu_custom_call.1} parent=1 // pred_region
      %13 = vsyncadd [#allocation3], 0
      %s15 = sshll.u32 %s0, 4
      %s16 = int_to_ptr.hbm [resolvable:$true] %s15
      %s17 = sshll.u32 [#allocation2], 4
      %s18 = int_to_ptr.vmem [resolvable:$true] %s17
      %20 = dma.hbm_to_vmem [thread:$0]  %s16, 256, %s18, [#allocation3]
    $region5: #{tpu_custom_call.1} parent=1 // pred_fallthru
      _
    // Predicated region
    $region6: #{tpu_custom_call.1} parent=1 // pred_check
      _
    $region7: #{tpu_custom_call.1} parent=1 // pred_check_branch
      %22 = sbr.rel (0) target = $region9
    $region8: #{tpu_custom_call.1} parent=1 // pred_region
      %24 = vsyncadd [#allocation6], 0
      %s26 = sshll.u32 %s1, 4
      %s27 = int_to_ptr.hbm [resolvable:$true] %s26
      %s28 = sshll.u32 [#allocation5], 4
      %s29 = int_to_ptr.vmem [resolvable:$true] %s28
      %31 = dma.hbm_to_vmem [thread:$0]  %s27, 32, %s29, [#allocation6]
    $region9: #{tpu_custom_call.1} parent=1 // pred_fallthru
      _
    // Predicated region
    $region10: #{tpu_custom_call.1} parent=1 // pred_check
      _
    $region11: #{tpu_custom_call.1} parent=1 // pred_check_branch
      %33 = sbr.rel (0) target = $region13
    $region12: #{tpu_custom_call.1} parent=1 // pred_region
      %35 = dma.done [#allocation3], 256
    $region13: #{tpu_custom_call.1} parent=1 // pred_fallthru
      _
    // Predicated region
    $region14: #{tpu_custom_call.1} parent=1 // pred_check
      _
    $region15: #{tpu_custom_call.1} parent=1 // pred_check_branch
      %37 = sbr.rel (0) target = $region17
    $region16: #{tpu_custom_call.1} parent=1 // pred_region
      %39 = dma.done [#allocation6], 32
    $region17: #{tpu_custom_call.1} parent=1 // pred_fallthru
      _
    %v40 = vld [vmem:[#allocation5] sm:$0x3]
    %v41 = vld [vmem:[#allocation2] sm:$0xff]
    %v42 = vld [vmem:[#allocation2 + $0x8] sm:$0xff]
    %v44 = vperm.slane %v40, 0
    %v45 = vperm.slane %v40, 1
    %v48 = vmul.f32 %v41, %v44
    %v49 = vmul.f32 %v42, %v45
    %50 = vst [vmem:[#allocation7] sm:$0xff] %v48
    %51 = vst [vmem:[#allocation7 + $0x8] sm:$0xff] %v49
    // Predicated region
    $region18: #{tpu_custom_call.1} parent=1 // pred_check
      _
    $region19: #{tpu_custom_call.1} parent=1 // pred_check_branch
      %53 = sbr.rel (0) target = $region21
    $region20: #{tpu_custom_call.1} parent=1 // pred_region
      %55 = vsyncadd [#allocation4], 0
      %s57 = sshll.u32 [#allocation7], 4
      %s58 = int_to_ptr.vmem [resolvable:$true] %s57
      %s59 = sshll.u32 %s2, 4
      %s60 = int_to_ptr.hbm [resolvable:$true] %s59
      %62 = dma.vmem_to_hbm [thread:$0]  %s58, 256, %s60, [#allocation4]
    $region21: #{tpu_custom_call.1} parent=1 // pred_fallthru
      _
    // Predicated region
    $region22: #{tpu_custom_call.1} parent=1 // pred_check
      _
    $region23: #{tpu_custom_call.1} parent=1 // pred_check_branch
      %64 = sbr.rel (0) target = $region25
    $region24: #{tpu_custom_call.1} parent=1 // pred_region
      %66 = dma.done [#allocation4], 256
    $region25: #{tpu_custom_call.1} parent=1 // pred_fallthru
      _
    %67 = vsyncpa [#allocation3], 1
    %68 = vsyncpa [#allocation6], 1
    %69 = vsyncpa [#allocation4], 1

</llo_original>
